<compile_context>
chip_gen: v7x
topology: tpu7x:2x2x1
jax: 0.10.0
libtpu: 0.0.40
codegen_flags: <defaults>
</compile_context>

<pallas_src>
import functools

import jax
import jax.numpy as jnp
from jax.experimental import pallas as pl
from jax.experimental.pallas import tpu as pltpu


def _infonce_block_kernel(q_ref, p_ref, n_ref, loss_ref, *, inv_T, batch, block_b):
    """Per-block InfoNCE: writes masked per-example losses for this batch tile."""
    q = q_ref[...].astype(jnp.float32)          # (bb, D)
    p = p_ref[...].astype(jnp.float32)          # (bb, D)
    n = n_ref[...].astype(jnp.float32)          # (bb, K, D)

    # F.normalize(p=2, eps=1e-12) == x / max(||x||, eps).  Instead of normalizing
    # the tensors (sqrt + divide over (bb,K,D)), scale the *scores* by
    # rsqrt(max(sum(x*x), eps^2)) == 1 / max(||x||, eps)  -- same semantics.
    eps_sq = 1e-24  # (1e-12)^2

    inv_q = jax.lax.rsqrt(jnp.maximum(jnp.sum(q * q, axis=-1, keepdims=True), eps_sq))  # (bb,1)
    inv_p = jax.lax.rsqrt(jnp.maximum(jnp.sum(p * p, axis=-1, keepdims=True), eps_sq))  # (bb,1)
    inv_n = jax.lax.rsqrt(jnp.maximum(jnp.sum(n * n, axis=-1), eps_sq))                 # (bb,K)

    # Positive score: per-row dot product (VPU multiply + lane reduce).
    pos_logit = jnp.sum(q * p, axis=-1, keepdims=True) * (inv_q * inv_p) * inv_T        # (bb,1)

    # Negative scores: VPU multiply + lane reduce.  (The MXU einsum alternative
    # lowers to block_b (1,D)x(D,K) matmuls at <1% utilization and can become
    # the critical path; this VPU form is always hidden under the neg DMA.)
    raw_neg = jnp.sum(q[:, None, :] * n, axis=-1)                                       # (bb,K)
    neg_logit = raw_neg * (inv_q * inv_n) * inv_T                                       # (bb,K)

    # CrossEntropy with label 0 (positive is class 0):
    #   loss_b = logsumexp([pos_logit_b, neg_logits_b]) - pos_logit_b
    m = jnp.maximum(pos_logit, jnp.max(neg_logit, axis=-1, keepdims=True))              # (bb,1)
    sum_exp = jnp.exp(pos_logit - m) + jnp.sum(jnp.exp(neg_logit - m), axis=-1,
                                               keepdims=True)                           # (bb,1)
    per_example = m + jnp.log(sum_exp) - pos_logit                                      # (bb,1)

    # Mask tail rows of the last (partial) batch block.  Pallas-padded rows hold
    # garbage and can produce NaN; the mask confines and discards them before the
    # store and the (B,1) out_shape means jnp.mean only averages real rows.
    # Do NOT remove this mask.
    row = (pl.program_id(0) * block_b
           + jax.lax.broadcasted_iota(jnp.int32, per_example.shape, 0))
    loss_ref[...] = jnp.where(row < batch, per_example, 0.0)


def _vmem_capacity_bytes():
    """Physical VMEM per TensorCore; conservative fallback if the query fails."""
    try:
        return int(pltpu.get_tpu_info().vmem_capacity_bytes)
    except Exception:
        return 64 * 1024 * 1024   # v7x per-TC -- the smallest of the fleet


def _choose_block_b(B, K, D, itemsize, vmem_bytes):
    """Batch tile sized against the chip's real VMEM (generation-aware).

    Working-set target is ~3/8 of physical VMEM (24 MiB on v7x's 64 MiB, capped
    at 36 MiB on 128 MiB v5e/v6e), which keeps per-grid-step overhead (~0.35 us)
    negligible while staying well under vmem_limit_bytes below.
    """
    if B <= 8:
        return B
    budget = min(vmem_bytes * 3 // 8, 36 * 1024 * 1024)
    # Per batch row: 2x double-buffered inputs (neg + anchor + pos) in the HBM
    # dtype, plus ~2 f32 neg-row equivalents for the elementwise temporaries
    # (n*n and q[:,None,:]*n before their lane reductions).
    bytes_per_row = 2 * (K + 2) * D * itemsize + 2 * K * D * 4
    tb = budget // max(bytes_per_row, 1)
    tb = max(8, min(tb, B, 2048))
    return (tb // 8) * 8             # keep sublane-aligned block shapes


def infonce_pallas(anchor, pos, neg, T=0.07, *, block_b=None):
    """anchor, pos: (B, D); neg: (B, K, D). Returns the scalar InfoNCE loss.

    Inputs may be f32 or bf16 (bf16 halves HBM traffic; tiles are upcast to f32
    inside the kernel so the math is f32 either way).
    """
    B, D = anchor.shape
    Bn, K, Dn = neg.shape
    assert pos.shape == (B, D) and Bn == B and Dn == D

    itemsize = jnp.dtype(anchor.dtype).itemsize
    vmem = _vmem_capacity_bytes()
    # Generation-aware VMEM limit: ~65% of physical (41 MiB on v7x's 64 MiB,
    # ~83 MiB on 128 MiB v5e/v6e), leaving headroom for compiler scratch.
    vmem_limit = min(int(vmem * 0.65), 96 * 1024 * 1024)

    if block_b is None:
        block_b = _choose_block_b(B, K, D, itemsize, vmem)

    grid = (pl.cdiv(B, block_b),)
    kernel = functools.partial(
        _infonce_block_kernel,
        inv_T=float(1.0 / T),   # T is static -> 1/T folded at compile time
        batch=B, block_b=block_b)

    def call(dim_sem):
        return pl.pallas_call(
            kernel,
            out_shape=jax.ShapeDtypeStruct((B, 1), jnp.float32),
            grid=grid,
            in_specs=[
                pl.BlockSpec((block_b, D), lambda i: (i, 0)),
                pl.BlockSpec((block_b, D), lambda i: (i, 0)),
                # NOTE: pipeline_mode=pl.Buffered(3) on this neg spec is a
                # v5e/v6e-only option IF profiling shows exposed DMA; left at the
                # default double-buffering so v7x's 64 MiB VMEM is not squeezed.
                pl.BlockSpec((block_b, K, D), lambda i: (i, 0, 0)),
            ],
            out_specs=pl.BlockSpec((block_b, 1), lambda i: (i, 0)),
            compiler_params=pltpu.CompilerParams(
                dimension_semantics=(dim_sem,),
                vmem_limit_bytes=vmem_limit),
        )(anchor, pos, neg)

    # Prefer CORE_PARALLEL so v7x's second TensorCore shares the batch loop
    # (plain "parallel" vs "arbitrary" changes essentially nothing); fall back
    # to "parallel" if this chip/runtime rejects it.
    core_parallel = getattr(pltpu, "CORE_PARALLEL", None)
    per_example_loss = None
    if core_parallel is not None:
        try:
            per_example_loss = call(core_parallel)
            per_example_loss.block_until_ready()
        except Exception:
            per_example_loss = None
    if per_example_loss is None:
        per_example_loss = call("parallel")

    # Final mean in the wrapper (per-block partials keep the grid parallel).
    return jnp.mean(per_example_loss)


def infonce_reference(anchor, pos, neg, T=0.07):
    """Pure-JAX reference matching the PyTorch module semantics (f32 math)."""
    def l2n(x):
        x = x.astype(jnp.float32)
        return x / jnp.maximum(jnp.linalg.norm(x, axis=-1, keepdims=True), 1e-12)

    q, p, n = l2n(anchor), l2n(pos), l2n(neg)
    pos_score = jnp.sum(q * p, axis=-1, keepdims=True)            # (B, 1)
    neg_score = jnp.einsum("bd,bkd->bk", q, n)                    # (B, K)
    logits = jnp.concatenate([pos_score, neg_score], axis=-1) / T
    log_probs = jax.nn.log_softmax(logits, axis=-1)
    return -jnp.mean(log_probs[:, 0])


if __name__ == "__main__":
    key = jax.random.PRNGKey(0)

    def make_inputs(k, B, D, num_neg, dtype=jnp.float32):
        # Mimic the module forward: reps[0]=anchor, reps[1]=positive, reps[2:]=negatives.
        keys = jax.random.split(k, 2 + num_neg)
        reps = [jax.random.normal(kk, (B, D), dtype=jnp.float32).astype(dtype)
                for kk in keys]
        anchor = reps[0]                    # (B, D)
        pos = reps[1]                       # (B, D)
        neg = jnp.stack(reps[2:], axis=1)   # (B, K, D) == torch.stack(reps[2:], dim=1)
        return anchor, pos, neg

    checks = []

    # 1) Module-like toy shape, small K, 2 batch blocks.
    a, p, n = make_inputs(jax.random.fold_in(key, 0), 16, 32, 6)
    checks.append((infonce_pallas(a, p, n, block_b=8), infonce_reference(a, p, n), 1e-5))

    # 2) Ragged batch (B % block_b != 0) -> exercises the tail mask.
    a, p, n = make_inputs(jax.random.fold_in(key, 1), 12, 32, 6)
    checks.append((infonce_pallas(a, p, n, block_b=8), infonce_reference(a, p, n), 1e-5))

    # 3) Larger D / K, auto block_b (generation-aware VMEM sizing).
    a, p, n = make_inputs(jax.random.fold_in(key, 2), 8, 128, 64)
    checks.append((infonce_pallas(a, p, n), infonce_reference(a, p, n), 1e-5))

    # 4) bf16 embeddings end-to-end (halves HBM traffic; kernel upcasts per tile).
    a, p, n = make_inputs(jax.random.fold_in(key, 3), 24, 64, 8, dtype=jnp.bfloat16)
    checks.append((infonce_pallas(a, p, n), infonce_reference(a, p, n), 1e-4))

    for got, want, tol in checks:
        got = jax.block_until_ready(got)
        want = jax.block_until_ready(want)
        assert jnp.allclose(got, want, atol=tol, rtol=tol), (got, want)

    print("KERNEL_OK")
</pallas_src>

<mosaic_0001>
module attributes {stable_mosaic.version = 11 : i64} {
  func.func @_infonce_block_kernel(%arg0: i32, %arg1: memref<8x32xf32, #tpu.memory_space<vmem>>, %arg2: memref<8x32xf32, #tpu.memory_space<vmem>>, %arg3: memref<8x6x32xf32, #tpu.memory_space<vmem>>, %arg4: memref<8x1xf32, #tpu.memory_space<vmem>>) attributes {dimension_semantics = [#tpu.dimension_semantics<core_parallel>], iteration_bounds = array<i64: 2>, scalar_prefetch = 0 : i64, scratch_operands = 0 : i64, tpu.core_type = #tpu.core_type<tc>, window_params = [{transform_indices = @transform_0, window_bounds = array<i64: 8, 32>}, {transform_indices = @transform_1, window_bounds = array<i64: 8, 32>}, {transform_indices = @transform_2, window_bounds = array<i64: 8, 6, 32>}, {transform_indices = @transform_3, window_bounds = array<i64: 8, 1>}]} {
    %c0 = arith.constant 0 : index
    %c0_0 = arith.constant 0 : index
    %0 = vector.load %arg1[%c0, %c0_0] : memref<8x32xf32, #tpu.memory_space<vmem>>, vector<8x32xf32>
    %c0_1 = arith.constant 0 : index
    %c0_2 = arith.constant 0 : index
    %1 = vector.load %arg2[%c0_1, %c0_2] : memref<8x32xf32, #tpu.memory_space<vmem>>, vector<8x32xf32>
    %c0_3 = arith.constant 0 : index
    %c0_4 = arith.constant 0 : index
    %c0_5 = arith.constant 0 : index
    %2 = vector.load %arg3[%c0_3, %c0_4, %c0_5] : memref<8x6x32xf32, #tpu.memory_space<vmem>>, vector<8x6x32xf32>
    %3 = arith.mulf %0, %0 : vector<8x32xf32>
    %cst = arith.constant dense<0.000000e+00> : vector<8xf32>
    %4 = vector.multi_reduction <add>, %3, %cst [1] : vector<8x32xf32> to vector<8xf32>
    %5 = vector.shape_cast %4 : vector<8xf32> to vector<8x1xf32>
    %cst_6 = arith.constant 1.000000e-24 : f32
    %6 = vector.broadcast %cst_6 : f32 to vector<8x1xf32>
    %7 = arith.maximumf %5, %6 : vector<8x1xf32>
    %8 = math.rsqrt %7 : vector<8x1xf32>
    %9 = arith.mulf %1, %1 : vector<8x32xf32>
    %cst_7 = arith.constant dense<0.000000e+00> : vector<8xf32>
    %10 = vector.multi_reduction <add>, %9, %cst_7 [1] : vector<8x32xf32> to vector<8xf32>
    %11 = vector.shape_cast %10 : vector<8xf32> to vector<8x1xf32>
    %cst_8 = arith.constant 1.000000e-24 : f32
    %12 = vector.broadcast %cst_8 : f32 to vector<8x1xf32>
    %13 = arith.maximumf %11, %12 : vector<8x1xf32>
    %14 = math.rsqrt %13 : vector<8x1xf32>
    %15 = arith.mulf %2, %2 : vector<8x6x32xf32>
    %cst_9 = arith.constant dense<0.000000e+00> : vector<8x6xf32>
    %16 = vector.multi_reduction <add>, %15, %cst_9 [2] : vector<8x6x32xf32> to vector<8x6xf32>
    %cst_10 = arith.constant 1.000000e-24 : f32
    %17 = vector.broadcast %cst_10 : f32 to vector<8x6xf32>
    %18 = arith.maximumf %16, %17 : vector<8x6xf32>
    %19 = math.rsqrt %18 : vector<8x6xf32>
    %20 = arith.mulf %0, %1 : vector<8x32xf32>
    %cst_11 = arith.constant dense<0.000000e+00> : vector<8xf32>
    %21 = vector.multi_reduction <add>, %20, %cst_11 [1] : vector<8x32xf32> to vector<8xf32>
    %22 = vector.shape_cast %21 : vector<8xf32> to vector<8x1xf32>
    %23 = arith.mulf %8, %14 : vector<8x1xf32>
    %24 = arith.mulf %22, %23 : vector<8x1xf32>
    %cst_12 = arith.constant 14.2857141 : f32
    %25 = vector.broadcast %cst_12 : f32 to vector<8x1xf32>
    %26 = arith.mulf %24, %25 : vector<8x1xf32>
    %27 = vector.shape_cast %0 : vector<8x32xf32> to vector<8x1x32xf32>
    %28 = vector.broadcast %27 : vector<8x1x32xf32> to vector<8x6x32xf32>
    %29 = arith.mulf %28, %2 : vector<8x6x32xf32>
    %cst_13 = arith.constant dense<0.000000e+00> : vector<8x6xf32>
    %30 = vector.multi_reduction <add>, %29, %cst_13 [2] : vector<8x6x32xf32> to vector<8x6xf32>
    %31 = vector.broadcast %8 : vector<8x1xf32> to vector<8x6xf32>
    %32 = arith.mulf %31, %19 : vector<8x6xf32>
    %33 = arith.mulf %30, %32 : vector<8x6xf32>
    %cst_14 = arith.constant 14.2857141 : f32
    %34 = vector.broadcast %cst_14 : f32 to vector<8x6xf32>
    %35 = arith.mulf %33, %34 : vector<8x6xf32>
    %cst_15 = arith.constant dense<0xFF800000> : vector<8xf32>
    %36 = vector.multi_reduction <maximumf>, %35, %cst_15 [1] : vector<8x6xf32> to vector<8xf32>
    %37 = vector.shape_cast %36 : vector<8xf32> to vector<8x1xf32>
    %38 = arith.maximumf %26, %37 : vector<8x1xf32>
    %39 = arith.subf %26, %38 : vector<8x1xf32>
    %40 = math.exp %39 : vector<8x1xf32>
    %41 = vector.broadcast %38 : vector<8x1xf32> to vector<8x6xf32>
    %42 = arith.subf %35, %41 : vector<8x6xf32>
    %43 = math.exp %42 : vector<8x6xf32>
    %cst_16 = arith.constant dense<0.000000e+00> : vector<8xf32>
    %44 = vector.multi_reduction <add>, %43, %cst_16 [1] : vector<8x6xf32> to vector<8xf32>
    %45 = vector.shape_cast %44 : vector<8xf32> to vector<8x1xf32>
    %46 = arith.addf %40, %45 : vector<8x1xf32>
    %47 = math.log %46 : vector<8x1xf32>
    %48 = arith.addf %38, %47 : vector<8x1xf32>
    %49 = arith.subf %48, %26 : vector<8x1xf32>
    %c8_i32 = arith.constant 8 : i32
    %50 = arith.muli %arg0, %c8_i32 : i32
    %51 = tpu.iota {dimensions = array<i32: 0>} : vector<8x1xi32>
    %52 = vector.broadcast %50 : i32 to vector<8x1xi32>
    %53 = arith.addi %52, %51 : vector<8x1xi32>
    %c16_i32 = arith.constant 16 : i32
    %54 = vector.broadcast %c16_i32 : i32 to vector<8x1xi32>
    %55 = arith.cmpi slt, %53, %54 : vector<8x1xi32>
    %cst_17 = arith.constant 0.000000e+00 : f32
    %56 = vector.broadcast %cst_17 : f32 to vector<8x1xf32>
    %57 = arith.select %55, %49, %56 : vector<8x1xi1>, vector<8x1xf32>
    %c0_18 = arith.constant 0 : index
    %c0_19 = arith.constant 0 : index
    %58 = vector.load %arg4[%c0_18, %c0_19] : memref<8x1xf32, #tpu.memory_space<vmem>>, vector<8x1xf32>
    tpu.vector_store %arg4[%c0_18, %c0_19], %57 {strides = array<i32>} : memref<8x1xf32, #tpu.memory_space<vmem>>, vector<8x1xf32>,
    return
  }
  func.func @transform_0(%arg0: i32) -> (i32, i32) {
    %c0_i32 = arith.constant 0 : i32
    %c0_i32_0 = arith.constant 0 : i32
    return %arg0, %c0_i32 : i32, i32
  }
  func.func @transform_1(%arg0: i32) -> (i32, i32) {
    %c0_i32 = arith.constant 0 : i32
    %c0_i32_0 = arith.constant 0 : i32
    return %arg0, %c0_i32 : i32, i32
  }
  func.func @transform_2(%arg0: i32) -> (i32, i32, i32) {
    %c0_i32 = arith.constant 0 : i32
    %c0_i32_0 = arith.constant 0 : i32
    %c0_i32_1 = arith.constant 0 : i32
    return %arg0, %c0_i32, %c0_i32_0 : i32, i32, i32
  }
  func.func @transform_3(%arg0: i32) -> (i32, i32) {
    %c0_i32 = arith.constant 0 : i32
    %c0_i32_0 = arith.constant 0 : i32
    return %arg0, %c0_i32 : i32, i32
  }
}

module attributes {stable_mosaic.version = 11 : i64} {
  func.func @_infonce_block_kernel(%arg0: i32, %arg1: memref<8x32xf32, #tpu.memory_space<vmem>>, %arg2: memref<8x32xf32, #tpu.memory_space<vmem>>, %arg3: memref<8x6x32xf32, #tpu.memory_space<vmem>>, %arg4: memref<8x1xf32, #tpu.memory_space<vmem>>) attributes {dimension_semantics = [#tpu.dimension_semantics<parallel>], iteration_bounds = array<i64: 2>, scalar_prefetch = 0 : i64, scratch_operands = 0 : i64, tpu.core_type = #tpu.core_type<tc>, window_params = [{transform_indices = @transform_0, window_bounds = array<i64: 8, 32>}, {transform_indices = @transform_1, window_bounds = array<i64: 8, 32>}, {transform_indices = @transform_2, window_bounds = array<i64: 8, 6, 32>}, {transform_indices = @transform_3, window_bounds = array<i64: 8, 1>}]} {
    %c0 = arith.constant 0 : index
    %c0_0 = arith.constant 0 : index
    %0 = vector.load %arg1[%c0, %c0_0] : memref<8x32xf32, #tpu.memory_space<vmem>>, vector<8x32xf32>
    %c0_1 = arith.constant 0 : index
    %c0_2 = arith.constant 0 : index
    %1 = vector.load %arg2[%c0_1, %c0_2] : memref<8x32xf32, #tpu.memory_space<vmem>>, vector<8x32xf32>
    %c0_3 = arith.constant 0 : index
    %c0_4 = arith.constant 0 : index
    %c0_5 = arith.constant 0 : index
    %2 = vector.load %arg3[%c0_3, %c0_4, %c0_5] : memref<8x6x32xf32, #tpu.memory_space<vmem>>, vector<8x6x32xf32>
    %3 = arith.mulf %0, %0 : vector<8x32xf32>
    %cst = arith.constant dense<0.000000e+00> : vector<8xf32>
    %4 = vector.multi_reduction <add>, %3, %cst [1] : vector<8x32xf32> to vector<8xf32>
    %5 = vector.shape_cast %4 : vector<8xf32> to vector<8x1xf32>
    %cst_6 = arith.constant 1.000000e-24 : f32
    %6 = vector.broadcast %cst_6 : f32 to vector<8x1xf32>
    %7 = arith.maximumf %5, %6 : vector<8x1xf32>
    %8 = math.rsqrt %7 : vector<8x1xf32>
    %9 = arith.mulf %1, %1 : vector<8x32xf32>
    %cst_7 = arith.constant dense<0.000000e+00> : vector<8xf32>
    %10 = vector.multi_reduction <add>, %9, %cst_7 [1] : vector<8x32xf32> to vector<8xf32>
    %11 = vector.shape_cast %10 : vector<8xf32> to vector<8x1xf32>
    %cst_8 = arith.constant 1.000000e-24 : f32
    %12 = vector.broadcast %cst_8 : f32 to vector<8x1xf32>
    %13 = arith.maximumf %11, %12 : vector<8x1xf32>
    %14 = math.rsqrt %13 : vector<8x1xf32>
    %15 = arith.mulf %2, %2 : vector<8x6x32xf32>
    %cst_9 = arith.constant dense<0.000000e+00> : vector<8x6xf32>
    %16 = vector.multi_reduction <add>, %15, %cst_9 [2] : vector<8x6x32xf32> to vector<8x6xf32>
    %cst_10 = arith.constant 1.000000e-24 : f32
    %17 = vector.broadcast %cst_10 : f32 to vector<8x6xf32>
    %18 = arith.maximumf %16, %17 : vector<8x6xf32>
    %19 = math.rsqrt %18 : vector<8x6xf32>
    %20 = arith.mulf %0, %1 : vector<8x32xf32>
    %cst_11 = arith.constant dense<0.000000e+00> : vector<8xf32>
    %21 = vector.multi_reduction <add>, %20, %cst_11 [1] : vector<8x32xf32> to vector<8xf32>
    %22 = vector.shape_cast %21 : vector<8xf32> to vector<8x1xf32>
    %23 = arith.mulf %8, %14 : vector<8x1xf32>
    %24 = arith.mulf %22, %23 : vector<8x1xf32>
    %cst_12 = arith.constant 14.2857141 : f32
    %25 = vector.broadcast %cst_12 : f32 to vector<8x1xf32>
    %26 = arith.mulf %24, %25 : vector<8x1xf32>
    %27 = vector.shape_cast %0 : vector<8x32xf32> to vector<8x1x32xf32>
    %28 = vector.broadcast %27 : vector<8x1x32xf32> to vector<8x6x32xf32>
    %29 = arith.mulf %28, %2 : vector<8x6x32xf32>
    %cst_13 = arith.constant dense<0.000000e+00> : vector<8x6xf32>
    %30 = vector.multi_reduction <add>, %29, %cst_13 [2] : vector<8x6x32xf32> to vector<8x6xf32>
    %31 = vector.broadcast %8 : vector<8x1xf32> to vector<8x6xf32>
    %32 = arith.mulf %31, %19 : vector<8x6xf32>
    %33 = arith.mulf %30, %32 : vector<8x6xf32>
    %cst_14 = arith.constant 14.2857141 : f32
    %34 = vector.broadcast %cst_14 : f32 to vector<8x6xf32>
    %35 = arith.mulf %33, %34 : vector<8x6xf32>
    %cst_15 = arith.constant dense<0xFF800000> : vector<8xf32>
    %36 = vector.multi_reduction <maximumf>, %35, %cst_15 [1] : vector<8x6xf32> to vector<8xf32>
    %37 = vector.shape_cast %36 : vector<8xf32> to vector<8x1xf32>
    %38 = arith.maximumf %26, %37 : vector<8x1xf32>
    %39 = arith.subf %26, %38 : vector<8x1xf32>
    %40 = math.exp %39 : vector<8x1xf32>
    %41 = vector.broadcast %38 : vector<8x1xf32> to vector<8x6xf32>
    %42 = arith.subf %35, %41 : vector<8x6xf32>
    %43 = math.exp %42 : vector<8x6xf32>
    %cst_16 = arith.constant dense<0.000000e+00> : vector<8xf32>
    %44 = vector.multi_reduction <add>, %43, %cst_16 [1] : vector<8x6xf32> to vector<8xf32>
    %45 = vector.shape_cast %44 : vector<8xf32> to vector<8x1xf32>
    %46 = arith.addf %40, %45 : vector<8x1xf32>
    %47 = math.log %46 : vector<8x1xf32>
    %48 = arith.addf %38, %47 : vector<8x1xf32>
    %49 = arith.subf %48, %26 : vector<8x1xf32>
    %c8_i32 = arith.constant 8 : i32
    %50 = arith.muli %arg0, %c8_i32 : i32
    %51 = tpu.iota {dimensions = array<i32: 0>} : vector<8x1xi32>
    %52 = vector.broadcast %50 : i32 to vector<8x1xi32>
    %53 = arith.addi %52, %51 : vector<8x1xi32>
    %c16_i32 = arith.constant 16 : i32
    %54 = vector.broadcast %c16_i32 : i32 to vector<8x1xi32>
    %55 = arith.cmpi slt, %53, %54 : vector<8x1xi32>
    %cst_17 = arith.constant 0.000000e+00 : f32
    %56 = vector.broadcast %cst_17 : f32 to vector<8x1xf32>
    %57 = arith.select %55, %49, %56 : vector<8x1xi1>, vector<8x1xf32>
    %c0_18 = arith.constant 0 : index
    %c0_19 = arith.constant 0 : index
    %58 = vector.load %arg4[%c0_18, %c0_19] : memref<8x1xf32, #tpu.memory_space<vmem>>, vector<8x1xf32>
    tpu.vector_store %arg4[%c0_18, %c0_19], %57 {strides = array<i32>} : memref<8x1xf32, #tpu.memory_space<vmem>>, vector<8x1xf32>,
    return
  }
  func.func @transform_0(%arg0: i32) -> (i32, i32) {
    %c0_i32 = arith.constant 0 : i32
    %c0_i32_0 = arith.constant 0 : i32
    return %arg0, %c0_i32 : i32, i32
  }
  func.func @transform_1(%arg0: i32) -> (i32, i32) {
    %c0_i32 = arith.constant 0 : i32
    %c0_i32_0 = arith.constant 0 : i32
    return %arg0, %c0_i32 : i32, i32
  }
  func.func @transform_2(%arg0: i32) -> (i32, i32, i32) {
    %c0_i32 = arith.constant 0 : i32
    %c0_i32_0 = arith.constant 0 : i32
    %c0_i32_1 = arith.constant 0 : i32
    return %arg0, %c0_i32, %c0_i32_0 : i32, i32, i32
  }
  func.func @transform_3(%arg0: i32) -> (i32, i32) {
    %c0_i32 = arith.constant 0 : i32
    %c0_i32_0 = arith.constant 0 : i32
    return %arg0, %c0_i32 : i32, i32
  }
}

</mosaic_0001>

<llo_original>
// kernel: tpu_custom_call.1
$region0: #{tpu_custom_call.1}
  #allocation0 [shape = 'u32[]', space=smem, size = 0x4, offset = 0x4, fixed_abs, tag = 'smem constant byte address 0x4 - core index']
  #allocation1 [shape = 'u32[144,128]{1,0:T(1,128)}', space=vmem, size = 0x12000, scoped, tag = 'internal scratch']
  %s0 = inlined_call_operand.vmem [shape: f32[16,32], index: 0, kind: input, shape index: {}]
  %s1 = inlined_call_operand.vmem [shape: f32[16,32], index: 1, kind: input, shape index: {}]
  %s2 = inlined_call_operand.vmem [shape: f32[16,6,32], index: 2, kind: input, shape index: {}]
  %s3 = inlined_call_operand.vmem [shape: f32[16,1], index: 3, kind: output, shape index: {}]
  %s4 = sld [smem:[#allocation0]]
  $region45: #{tpu_custom_call.1} parent=0
    _
  %s6 = ssub.s32 1, %s4
  %s7 = scalar_select 0, %s6, %s4
  loop: start=0, step=1, limit=4
  $region2: #{tpu_custom_call.1} parent=0 // loop_pre_header
    _
  $region3: #{tpu_custom_call.1} parent=0 // loop_header
    %s9 = sphi 0, %s13
    %p10 = scmp.ge.s32.totalorder %s9, 4
    %s19 = sphi 0, %s21
    %s22 = sphi 0, %s19
    %s23 = sphi 0, %s22
    %s39 = sphi 0, %s23
    %s45 = sphi 0, %s47
    %s48 = sphi 0, %s45
    %s49 = sphi 0, %s48
    %s65 = sphi 0, %s49
    %s71 = sphi 0, %s73
    %s74 = sphi 0, %s71
    %s75 = sphi 0, %s74
    %s91 = sphi 0, %s75
    %s97 = sphi 0, %s99
    %s100 = sphi 0, %s97
    %s101 = sphi 0, %s100
    %s117 = sphi 0, %s101
  $region4: #{tpu_custom_call.1} parent=0 // loop_header_branch
    %12 = sbr.rel (%p10) target = $region8
  $region5: #{tpu_custom_call.1} parent=0 // loop_body
    %s14 = ssub.s32 %s9, 1
    %s15 = ssub.s32 %s9, 2
    %s16 = sadd.s32 %s9, 1
    %s17 = ssub.s32 %s9, %s16
    %p18 = scmp.eq.s32.totalorder %s17, 0
    %s20 = sadd.s32 %s19, 1
    %s21 = scalar_select %p18, %s19, %s20
    %p24 = pneg %p18
    %p25 = scmp.eq.s32.totalorder %s9, 1
    %p26 = por %p24, %p25
    %p27 = scmp.ne.s32.totalorder %s19, %s22
    %p28 = scmp.eq.s32.totalorder %s9, 0
    %p29 = por %p27, %p28
    %p30 = scmp.ne.s32.totalorder %s19, %s22
    %p31 = scmp.eq.s32.totalorder %s14, 1
    %p32 = por %p30, %p31
    %p33 = scmp.ne.s32.totalorder %s22, %s23
    %p34 = scmp.eq.s32.totalorder %s14, 0
    %p35 = por %p33, %p34
    %p36 = scmp.ne.s32.totalorder %s22, %s23
    %p37 = scmp.eq.s32.totalorder %s15, 1
    %p38 = por %p36, %p37
    %p40 = scmp.ne.s32.totalorder %s23, %s39
    %p41 = scmp.eq.s32.totalorder %s15, 0
    %p42 = por %p40, %p41
    %s43 = ssub.s32 %s9, %s16
    %p44 = scmp.eq.s32.totalorder %s43, 0
    %s46 = sadd.s32 %s45, 1
    %s47 = scalar_select %p44, %s45, %s46
    %p50 = pneg %p44
    %p51 = scmp.eq.s32.totalorder %s9, 1
    %p52 = por %p50, %p51
    %p53 = scmp.ne.s32.totalorder %s45, %s48
    %p54 = scmp.eq.s32.totalorder %s9, 0
    %p55 = por %p53, %p54
    %p56 = scmp.ne.s32.totalorder %s45, %s48
    %p57 = scmp.eq.s32.totalorder %s14, 1
    %p58 = por %p56, %p57
    %p59 = scmp.ne.s32.totalorder %s48, %s49
    %p60 = scmp.eq.s32.totalorder %s14, 0
    %p61 = por %p59, %p60
    %p62 = scmp.ne.s32.totalorder %s48, %s49
    %p63 = scmp.eq.s32.totalorder %s15, 1
    %p64 = por %p62, %p63
    %p66 = scmp.ne.s32.totalorder %s49, %s65
    %p67 = scmp.eq.s32.totalorder %s15, 0
    %p68 = por %p66, %p67
    %s69 = ssub.s32 %s9, %s16
    %p70 = scmp.eq.s32.totalorder %s69, 0
    %s72 = sadd.s32 %s71, 1
    %s73 = scalar_select %p70, %s71, %s72
    %p76 = pneg %p70
    %p77 = scmp.eq.s32.totalorder %s9, 1
    %p78 = por %p76, %p77
    %p79 = scmp.ne.s32.totalorder %s71, %s74
    %p80 = scmp.eq.s32.totalorder %s9, 0
    %p81 = por %p79, %p80
    %p82 = scmp.ne.s32.totalorder %s71, %s74
    %p83 = scmp.eq.s32.totalorder %s14, 1
    %p84 = por %p82, %p83
    %p85 = scmp.ne.s32.totalorder %s74, %s75
    %p86 = scmp.eq.s32.totalorder %s14, 0
    %p87 = por %p85, %p86
    %p88 = scmp.ne.s32.totalorder %s74, %s75
    %p89 = scmp.eq.s32.totalorder %s15, 1
    %p90 = por %p88, %p89
    %p92 = scmp.ne.s32.totalorder %s75, %s91
    %p93 = scmp.eq.s32.totalorder %s15, 0
    %p94 = por %p92, %p93
    %s95 = ssub.s32 %s9, %s16
    %p96 = scmp.eq.s32.totalorder %s95, 0
    %s98 = sadd.s32 %s97, 1
    %s99 = scalar_select %p96, %s97, %s98
    %p102 = pneg %p96
    %p103 = scmp.eq.s32.totalorder %s9, 1
    %p104 = por %p102, %p103
    %p105 = scmp.ne.s32.totalorder %s97, %s100
    %p106 = scmp.eq.s32.totalorder %s9, 0
    %p107 = por %p105, %p106
    %p108 = scmp.ne.s32.totalorder %s97, %s100
    %p109 = scmp.eq.s32.totalorder %s14, 1
    %p110 = por %p108, %p109
    %p111 = scmp.ne.s32.totalorder %s100, %s101
    %p112 = scmp.eq.s32.totalorder %s14, 0
    %p113 = por %p111, %p112
    %p114 = scmp.ne.s32.totalorder %s100, %s101
    %p115 = scmp.eq.s32.totalorder %s15, 1
    %p116 = por %p114, %p115
    %p118 = scmp.ne.s32.totalorder %s101, %s117
    %p119 = scmp.eq.s32.totalorder %s15, 0
    %p120 = por %p118, %p119
    %p121 = scmp.le.s32.totalorder 1, %s9
    %p122 = scmp.lt.s32.totalorder %s9, 3
    %p123 = pnand %p121, %p122
    %p124 = pneg %p123
    // Predicated region
    $region9: #{tpu_custom_call.1} parent=5 // pred_check
      _
    $region10: #{tpu_custom_call.1} parent=5 // pred_check_branch
      %126 = sbr.rel (%p123) target = $region12
    $region11: #{tpu_custom_call.1} parent=5 // pred_region
      %s127 = ssub.s32 %s9, 1
    $region12: #{tpu_custom_call.1} parent=5 // pred_fallthru
      _
    %p128 = scmp.lt.s32.totalorder %s9, 2
    // Predicated region
    $region13: #{tpu_custom_call.1} parent=5 // pred_check
      %p129 = pneg %p128
    $region14: #{tpu_custom_call.1} parent=5 // pred_check_branch
      %131 = sbr.rel (%p129) target = $region16
    $region15: #{tpu_custom_call.1} parent=5 // pred_region
      // Predicated region
      $region17: #{tpu_custom_call.1} parent=15 // pred_check
        %p132 = pneg %p29
      $region18: #{tpu_custom_call.1} parent=15 // pred_check_branch
        %134 = sbr.rel (%p132) target = $region20
      $region19: #{tpu_custom_call.1} parent=15 // pred_region
        %p135 = scmp.lt.s32.totalorder %s9, 1
        %s136 = scalar_select %p135, %s9, 1
        %s137 = smul.addr %s136, 8
        %s138 = scalar_lea.vmem %s0, %s137
      $region20: #{tpu_custom_call.1} parent=15 // pred_fallthru
        _
      // Predicated region
      $region21: #{tpu_custom_call.1} parent=15 // pred_check
        %p139 = pneg %p55
      $region22: #{tpu_custom_call.1} parent=15 // pred_check_branch
        %141 = sbr.rel (%p139) target = $region24
      $region23: #{tpu_custom_call.1} parent=15 // pred_region
        %p142 = scmp.lt.s32.totalorder %s9, 1
        %s143 = scalar_select %p142, %s9, 1
        %s144 = smul.addr %s143, 8
        %s145 = scalar_lea.vmem %s1, %s144
      $region24: #{tpu_custom_call.1} parent=15 // pred_fallthru
        _
      // Predicated region
      $region25: #{tpu_custom_call.1} parent=15 // pred_check
        %p146 = pneg %p81
      $region26: #{tpu_custom_call.1} parent=15 // pred_check_branch
        %148 = sbr.rel (%p146) target = $region28
      $region27: #{tpu_custom_call.1} parent=15 // pred_region
        %s149 = smul.u32 8, %s9
        %p150 = scmp.lt.s32.totalorder %s149, 15
        %s151 = scalar_select %p150, %s149, 15
        %s152 = smul.addr %s151, 8
        %s153 = scalar_lea.vmem %s2, %s152
        %s154 = smul.u32 8, %s9
      $region28: #{tpu_custom_call.1} parent=15 // pred_fallthru
        _
    $region16: #{tpu_custom_call.1} parent=5 // pred_fallthru
      _
    %p155 = scmp.le.s32.totalorder 1, %s9
    %p156 = scmp.lt.s32.totalorder %s9, 3
    %p157 = pnand %p155, %p156
    %p158 = pneg %p157
    // Predicated region
    $region29: #{tpu_custom_call.1} parent=5 // pred_check
      _
    $region30: #{tpu_custom_call.1} parent=5 // pred_check_branch
      %160 = sbr.rel (%p157) target = $region32
    $region31: #{tpu_custom_call.1} parent=5 // pred_region
      %s161 = ssub.s32 %s9, 1
      %p162 = scmp.lt.s32.totalorder %s14, 1
      %s163 = scalar_select %p162, %s14, 1
      %s164 = smul.addr %s163, 8
      %s165 = scalar_lea.vmem %s0, %s164
      %p166 = pneg %p35
      %p167 = pneg %p32
      %p168 = scmp.lt.s32.totalorder %s14, 1
      %s169 = scalar_select %p168, %s14, 1
      %s170 = smul.addr %s169, 8
      %s171 = scalar_lea.vmem %s1, %s170
      %p172 = pneg %p61
      %p173 = pneg %p58
      %s174 = smul.u32 8, %s14
      %p175 = scmp.lt.s32.totalorder %s174, 15
      %s176 = scalar_select %p175, %s174, 15
      %s177 = smul.addr %s176, 8
      %s178 = scalar_lea.vmem %s2, %s177
      %p179 = pneg %p87
      %p180 = pneg %p84
      %p181 = pneg %p113
      %p182 = pneg %p110
      %p183 = scmp.lt.s32.totalorder %s14, 1
      %s184 = scalar_select %p183, %s14, 1
      %s185 = smul.addr %s184, 8
      %s186 = scalar_lea.vmem %s3, %s185
      %p187 = scmp.lt.s32.totalorder %s14, 1
      %s188 = scalar_select %p187, %s14, 1
      %s189 = smul.addr %s188, 8
      %s190 = scalar_lea.vmem %s0, %s189
      %p191 = scmp.lt.s32.totalorder %s14, 1
      %s192 = scalar_select %p191, %s14, 1
      %s193 = smul.addr %s192, 8
      %s194 = scalar_lea.vmem %s1, %s193
      %s195 = smul.u32 8, %s14
      %p196 = scmp.lt.s32.totalorder %s195, 15
      %s197 = scalar_select %p196, %s195, 15
      %s198 = smul.addr %s197, 8
      %s199 = scalar_lea.vmem %s2, %s198
      %s200 = smul.u32 8, %s14
      %p201 = scmp.lt.s32.totalorder %s14, 1
      %s202 = scalar_select %p201, %s14, 1
      %s203 = smul.addr %s202, 8
      %s204 = scalar_lea.vmem %s3, %s203
      %v205 = vld [vmem:[%s190] sm:$0xff]
      %v206 = vld [vmem:[%s194] sm:$0xff]
      %v207 = vld [vmem:[%s199] sm:$0x3f]
      %v208 = vld [vmem:[%s199 + $0x8] sm:$0x3f]
      %v209 = vld [vmem:[%s199 + $0x10] sm:$0x3f]
      %v210 = vld [vmem:[%s199 + $0x18] sm:$0x3f]
      %v211 = vld [vmem:[%s199 + $0x20] sm:$0x3f]
      %v212 = vld [vmem:[%s199 + $0x28] sm:$0x3f]
      %v213 = vld [vmem:[%s199 + $0x30] sm:$0x3f]
      %v214 = vld [vmem:[%s199 + $0x38] sm:$0x3f]
      %v215 = vmul.f32 %v205, %v205
      %vm216 = vcmask 261120
      %v217 = vsel %vm216, %v215, 0.0
      %218 = vadd.xlane.f32.xlu0 %v217
      %v219 = vpop.xlane.xlu0 %218
      %v220 = vmax.f32 %v219, 1e-24
      %v221 = vrsqrt.pop %v220
      %v222 = vmul.f32 %v206, %v206
      %v223 = vsel %vm216, %v222, 0.0
      %224 = vadd.xlane.f32.xlu0 %v223
      %v225 = vpop.xlane.xlu0 %224
      %v226 = vmax.f32 %v225, 1e-24
      %v227 = vrsqrt.pop %v226
      %v228 = vmul.f32 %v207, %v207
      %v229 = vmul.f32 %v208, %v208
      %v230 = vmul.f32 %v209, %v209
      %v231 = vmul.f32 %v210, %v210
      %v232 = vmul.f32 %v211, %v211
      %v233 = vmul.f32 %v212, %v212
      %v234 = vmul.f32 %v213, %v213
      %v235 = vmul.f32 %v214, %v214
      %vm236 = vcmask 259072
      %v237 = vsel %vm236, %v228, 0.0
      %238 = vadd.xlane.f32.xlu0 %v237
      %v239 = vpop.xlane.xlu0 %238
      %v240 = vsel %vm236, %v229, 0.0
      %241 = vadd.xlane.f32.xlu0 %v240
      %v242 = vpop.xlane.xlu0 %241
      %v243 = vsel %vm236, %v230, 0.0
      %244 = vadd.xlane.f32.xlu0 %v243
      %v245 = vpop.xlane.xlu0 %244
      %v246 = vsel %vm236, %v231, 0.0
      %247 = vadd.xlane.f32.xlu0 %v246
      %v248 = vpop.xlane.xlu0 %247
      %v249 = vsel %vm236, %v232, 0.0
      %250 = vadd.xlane.f32.xlu0 %v249
      %v251 = vpop.xlane.xlu0 %250
      %v252 = vsel %vm236, %v233, 0.0
      %253 = vadd.xlane.f32.xlu0 %v252
      %v254 = vpop.xlane.xlu0 %253
      %v255 = vsel %vm236, %v234, 0.0
      %256 = vadd.xlane.f32.xlu0 %v255
      %v257 = vpop.xlane.xlu0 %256
      %v258 = vsel %vm236, %v235, 0.0
      %259 = vadd.xlane.f32.xlu0 %v258
      %v260 = vpop.xlane.xlu0 %259
      %v261 = vmax.f32 %v239, 1e-24
      %v262 = vmax.f32 %v242, 1e-24
      %v263 = vmax.f32 %v245, 1e-24
      %v264 = vmax.f32 %v248, 1e-24
      %v265 = vmax.f32 %v251, 1e-24
      %v266 = vmax.f32 %v254, 1e-24
      %v267 = vmax.f32 %v257, 1e-24
      %v268 = vmax.f32 %v260, 1e-24
      %v269 = vrsqrt.pop %v261
      %v270 = vrsqrt.pop %v262
      %v271 = vrsqrt.pop %v263
      %v272 = vrsqrt.pop %v264
      %v273 = vrsqrt.pop %v265
      %v274 = vrsqrt.pop %v266
      %v275 = vrsqrt.pop %v267
      %v276 = vrsqrt.pop %v268
      %v277 = vmul.f32 %v205, %v206
      %v278 = vsel %vm216, %v277, 0.0
      %279 = vadd.xlane.f32.xlu0 %v278
      %v280 = vpop.xlane.xlu0 %279
      %v281 = vmul.f32 %v221, %v227
      %v282 = vmul.f32 %v280, %v281
      %v283 = vmul.f32 %v282, 14.285714
      %v285 = vcombine.high %v205, %v205
      %v287 = vunpack.c.l.s4 1966171168
      %v288 = vunpack.c.0.s8 %v287
      %v289 = vlaneseq
      %v290 = vshrl.u32 %v289, 7
      %v291 = vsub.s32 %v288, %v290
      %v292 = vrot.slane %v205, %v291
      %v294 = vunpack.c.l.s4 1966171168
      %v295 = vunpack.c.0.s8 %v294
      %v296 = vlaneseq
      %v297 = vshrl.u32 %v296, 7
      %v298 = vsub.s32 %v295, %v297
      %v299 = vrot.slane %v285, %v298
      %v300 = vcombine.high %v292, %v292
      %v301 = vcombine.high %v299, %v299
      %v303 = vunpack.c.l.s4 1966171168
      %v304 = vunpack.c.0.s8 %v303
      %v305 = vlaneseq
      %v306 = vshrl.u32 %v305, 7
      %v307 = vsub.s32 %v304, %v306
      %v308 = vrot.slane %v292, %v307
      %v310 = vunpack.c.l.s4 1966171168
      %v311 = vunpack.c.0.s8 %v310
      %v312 = vlaneseq
      %v313 = vshrl.u32 %v312, 7
      %v314 = vsub.s32 %v311, %v313
      %v315 = vrot.slane %v299, %v314
      %v317 = vunpack.c.l.s4 1966171168
      %v318 = vunpack.c.0.s8 %v317
      %v319 = vlaneseq
      %v320 = vshrl.u32 %v319, 7
      %v321 = vsub.s32 %v318, %v320
      %v322 = vrot.slane %v300, %v321
      %v324 = vunpack.c.l.s4 1966171168
      %v325 = vunpack.c.0.s8 %v324
      %v326 = vlaneseq
      %v327 = vshrl.u32 %v326, 7
      %v328 = vsub.s32 %v325, %v327
      %v329 = vrot.slane %v301, %v328
      %v330 = vcombine.high %v308, %v308
      %v331 = vcombine.high %v315, %v315
      %v332 = vcombine.high %v322, %v322
      %v333 = vcombine.high %v329, %v329
      %v334 = vlaneseq
      %v335 = vshrl.u32 %v334, 7
      %v336 = vsub.s32 0, %v335
      %v337 = vrot.slane %v308, %v336
      %v338 = vlaneseq
      %v339 = vshrl.u32 %v338, 7
      %v340 = vsub.s32 0, %v339
      %v341 = vrot.slane %v322, %v340
      %v342 = vlaneseq
      %v343 = vshrl.u32 %v342, 7
      %v344 = vsub.s32 0, %v343
      %v345 = vrot.slane %v330, %v344
      %v346 = vlaneseq
      %v347 = vshrl.u32 %v346, 7
      %v348 = vsub.s32 0, %v347
      %v349 = vrot.slane %v332, %v348
      %v350 = vlaneseq
      %v351 = vshrl.u32 %v350, 7
      %v352 = vsub.s32 0, %v351
      %v353 = vrot.slane %v315, %v352
      %v354 = vlaneseq
      %v355 = vshrl.u32 %v354, 7
      %v356 = vsub.s32 0, %v355
      %v357 = vrot.slane %v329, %v356
      %v358 = vlaneseq
      %v359 = vshrl.u32 %v358, 7
      %v360 = vsub.s32 0, %v359
      %v361 = vrot.slane %v331, %v360
      %v362 = vlaneseq
      %v363 = vshrl.u32 %v362, 7
      %v364 = vsub.s32 0, %v363
      %v365 = vrot.slane %v333, %v364
      %v374 = vmul.f32 %v337, %v207
      %v375 = vmul.f32 %v341, %v208
      %v376 = vmul.f32 %v345, %v209
      %v377 = vmul.f32 %v349, %v210
      %v378 = vmul.f32 %v353, %v211
      %v379 = vmul.f32 %v357, %v212
      %v380 = vmul.f32 %v361, %v213
      %v381 = vmul.f32 %v365, %v214
      %v382 = vsel %vm236, %v374, 0.0
      %383 = vadd.xlane.f32.xlu0 %v382
      %v384 = vpop.xlane.xlu0 %383
      %v385 = vsel %vm236, %v375, 0.0
      %386 = vadd.xlane.f32.xlu0 %v385
      %v387 = vpop.xlane.xlu0 %386
      %v388 = vsel %vm236, %v376, 0.0
      %389 = vadd.xlane.f32.xlu0 %v388
      %v390 = vpop.xlane.xlu0 %389
      %v391 = vsel %vm236, %v377, 0.0
      %392 = vadd.xlane.f32.xlu0 %v391
      %v393 = vpop.xlane.xlu0 %392
      %v394 = vsel %vm236, %v378, 0.0
      %395 = vadd.xlane.f32.xlu0 %v394
      %v396 = vpop.xlane.xlu0 %395
      %v397 = vsel %vm236, %v379, 0.0
      %398 = vadd.xlane.f32.xlu0 %v397
      %v399 = vpop.xlane.xlu0 %398
      %v400 = vsel %vm236, %v380, 0.0
      %401 = vadd.xlane.f32.xlu0 %v400
      %v402 = vpop.xlane.xlu0 %401
      %v403 = vsel %vm236, %v381, 0.0
      %404 = vadd.xlane.f32.xlu0 %v403
      %v405 = vpop.xlane.xlu0 %404
      %v414 = vlaneseq
      %v415 = vand.u32 %v414, 127
      %v416 = vlaneseq
      %v417 = vshrl.u32 %v416, 7
      %v418 = vsub.s32 %v415, %v417
      %v419 = vrot.slane %v269, %v418
      %v420 = vlaneseq
      %v421 = vshrl.u32 %v420, 7
      %v422 = vsub.s32 %v415, %v421
      %v423 = vrot.slane %v270, %v422
      %v424 = vlaneseq
      %v425 = vshrl.u32 %v424, 7
      %v426 = vsub.s32 %v415, %v425
      %v427 = vrot.slane %v271, %v426
      %v428 = vlaneseq
      %v429 = vshrl.u32 %v428, 7
      %v430 = vsub.s32 %v415, %v429
      %v431 = vrot.slane %v272, %v430
      %v432 = vlaneseq
      %v433 = vshrl.u32 %v432, 7
      %v434 = vsub.s32 %v415, %v433
      %v435 = vrot.slane %v273, %v434
      %v436 = vlaneseq
      %v437 = vshrl.u32 %v436, 7
      %v438 = vsub.s32 %v415, %v437
      %v439 = vrot.slane %v274, %v438
      %v440 = vlaneseq
      %v441 = vshrl.u32 %v440, 7
      %v442 = vsub.s32 %v415, %v441
      %v443 = vrot.slane %v275, %v442
      %v444 = vlaneseq
      %v445 = vshrl.u32 %v444, 7
      %v446 = vsub.s32 %v415, %v445
      %v447 = vrot.slane %v276, %v446
      %vm448 = vcmask 1041409
      %v449 = vsel %vm448, %v423, %v419
      %vm450 = vcmask 1042434
      %v451 = vsel %vm450, %v427, %v449
      %vm452 = vcmask 1043459
      %v453 = vsel %vm452, %v431, %v451
      %vm454 = vcmask 1044484
      %v455 = vsel %vm454, %v435, %v453
      %vm456 = vcmask 1045509
      %v457 = vsel %vm456, %v439, %v455
      %vm458 = vcmask 1046534
      %v459 = vsel %vm458, %v443, %v457
      %vm460 = vcmask 1047559
      %v461 = vsel %vm460, %v447, %v459
      %v463 = vmul.f32 %v221, %v461
      %v465 = vlaneseq
      %v466 = vshrl.u32 %v465, 7
      %v467 = vsub.s32 0, %v466
      %v468 = vrot.slane %v463, %v467
      %470 = vbcast.lane.b32.xlu0 %v468, 256
      %v471 = vpop.permute.xlu0 %470
      %v472 = vlaneseq
      %v473 = vshrl.u32 %v472, 7
      %v474 = vsub.s32 1, %v473
      %v475 = vrot.slane %v463, %v474
      %477 = vbcast.lane.b32.xlu0 %v475, 256
      %v478 = vpop.permute.xlu0 %477
      %v479 = vlaneseq
      %v480 = vshrl.u32 %v479, 7
      %v481 = vsub.s32 2, %v480
      %v482 = vrot.slane %v463, %v481
      %484 = vbcast.lane.b32.xlu0 %v482, 256
      %v485 = vpop.permute.xlu0 %484
      %v486 = vlaneseq
      %v487 = vshrl.u32 %v486, 7
      %v488 = vsub.s32 3, %v487
      %v489 = vrot.slane %v463, %v488
      %491 = vbcast.lane.b32.xlu0 %v489, 256
      %v492 = vpop.permute.xlu0 %491
      %v493 = vlaneseq
      %v494 = vshrl.u32 %v493, 7
      %v495 = vsub.s32 4, %v494
      %v496 = vrot.slane %v463, %v495
      %498 = vbcast.lane.b32.xlu0 %v496, 256
      %v499 = vpop.permute.xlu0 %498
      %v500 = vlaneseq
      %v501 = vshrl.u32 %v500, 7
      %v502 = vsub.s32 5, %v501
      %v503 = vrot.slane %v463, %v502
      %505 = vbcast.lane.b32.xlu0 %v503, 256
      %v506 = vpop.permute.xlu0 %505
      %v507 = vlaneseq
      %v508 = vshrl.u32 %v507, 7
      %v509 = vsub.s32 6, %v508
      %v510 = vrot.slane %v463, %v509
      %512 = vbcast.lane.b32.xlu0 %v510, 256
      %v513 = vpop.permute.xlu0 %512
      %v514 = vlaneseq
      %v515 = vshrl.u32 %v514, 7
      %v516 = vsub.s32 7, %v515
      %v517 = vrot.slane %v463, %v516
      %519 = vbcast.lane.b32.xlu0 %v517, 256
      %v520 = vpop.permute.xlu0 %519
      %v529 = vmul.f32 %v384, %v471
      %v530 = vmul.f32 %v387, %v478
      %v531 = vmul.f32 %v390, %v485
      %v532 = vmul.f32 %v393, %v492
      %v533 = vmul.f32 %v396, %v499
      %v534 = vmul.f32 %v399, %v506
      %v535 = vmul.f32 %v402, %v513
      %v536 = vmul.f32 %v405, %v520
      %v537 = vmul.f32 %v529, 14.285714
      %v538 = vmul.f32 %v530, 14.285714
      %v539 = vmul.f32 %v531, 14.285714
      %v540 = vmul.f32 %v532, 14.285714
      %v541 = vmul.f32 %v533, 14.285714
      %v542 = vmul.f32 %v534, 14.285714
      %v543 = vmul.f32 %v535, 14.285714
      %v544 = vmul.f32 %v536, 14.285714
      %553 = vset.pattern.permute.xlu0 0
      %554 = vperm.xlu0 %553, %v537
      %v555 = vpop.permute.xlu0 %554
      %556 = vset.pattern.permute.xlu0 0
      %557 = vperm.xlu0 %556, %v538
      %v558 = vpop.permute.xlu0 %557
      %559 = vset.pattern.permute.xlu0 0
      %560 = vperm.xlu0 %559, %v539
      %v561 = vpop.permute.xlu0 %560
      %562 = vset.pattern.permute.xlu0 0
      %563 = vperm.xlu0 %562, %v540
      %v564 = vpop.permute.xlu0 %563
      %565 = vset.pattern.permute.xlu0 0
      %566 = vperm.xlu0 %565, %v541
      %v567 = vpop.permute.xlu0 %566
      %568 = vset.pattern.permute.xlu0 0
      %569 = vperm.xlu0 %568, %v542
      %v570 = vpop.permute.xlu0 %569
      %571 = vset.pattern.permute.xlu0 0
      %572 = vperm.xlu0 %571, %v543
      %v573 = vpop.permute.xlu0 %572
      %574 = vset.pattern.permute.xlu0 0
      %575 = vperm.xlu0 %574, %v544
      %v576 = vpop.permute.xlu0 %575
      %v577 = vlaneseq
      %v578 = vshrl.u32 %v577, 7
      %v579 = vsub.s32 %v415, %v578
      %v580 = vrot.slane %v555, %v579
      %v581 = vlaneseq
      %v582 = vshrl.u32 %v581, 7
      %v583 = vsub.s32 %v415, %v582
      %v584 = vrot.slane %v558, %v583
      %v585 = vlaneseq
      %v586 = vshrl.u32 %v585, 7
      %v587 = vsub.s32 %v415, %v586
      %v588 = vrot.slane %v561, %v587
      %v589 = vlaneseq
      %v590 = vshrl.u32 %v589, 7
      %v591 = vsub.s32 %v415, %v590
      %v592 = vrot.slane %v564, %v591
      %v593 = vlaneseq
      %v594 = vshrl.u32 %v593, 7
      %v595 = vsub.s32 %v415, %v594
      %v596 = vrot.slane %v567, %v595
      %v597 = vlaneseq
      %v598 = vshrl.u32 %v597, 7
      %v599 = vsub.s32 %v415, %v598
      %v600 = vrot.slane %v570, %v599
      %v601 = vlaneseq
      %v602 = vshrl.u32 %v601, 7
      %v603 = vsub.s32 %v415, %v602
      %v604 = vrot.slane %v573, %v603
      %v605 = vlaneseq
      %v606 = vshrl.u32 %v605, 7
      %v607 = vsub.s32 %v415, %v606
      %v608 = vrot.slane %v576, %v607
      %v609 = vsel %vm448, %v584, %v580
      %v610 = vsel %vm450, %v588, %v609
      %v611 = vsel %vm452, %v592, %v610
      %v612 = vsel %vm454, %v596, %v611
      %v613 = vsel %vm456, %v600, %v612
      %v614 = vsel %vm458, %v604, %v613
      %v615 = vsel %vm460, %v608, %v614
      %vm617 = vcmask 48128
      %v618 = vsel %vm617, %v615, -inf
      %619 = vmax.xlane.f32.xlu0 %v618
      %v620 = vpop.xlane.xlu0 %619
      %v621 = vmax.f32 %v283, %v620
      %v622 = vsub.f32 %v283, %v621
      %v623 = vmul.f32 %v622, 1.442695
      %v624 = vpow.pop %v623
      %v626 = vlaneseq
      %v627 = vshrl.u32 %v626, 7
      %v628 = vsub.s32 0, %v627
      %v629 = vrot.slane %v621, %v628
      %v630 = vlaneseq
      %v631 = vshrl.u32 %v630, 7
      %v632 = vsub.s32 1, %v631
      %v633 = vrot.slane %v621, %v632
      %v634 = vlaneseq
      %v635 = vshrl.u32 %v634, 7
      %v636 = vsub.s32 2, %v635
      %v637 = vrot.slane %v621, %v636
      %v638 = vlaneseq
      %v639 = vshrl.u32 %v638, 7
      %v640 = vsub.s32 3, %v639
      %v641 = vrot.slane %v621, %v640
      %v642 = vlaneseq
      %v643 = vshrl.u32 %v642, 7
      %v644 = vsub.s32 4, %v643
      %v645 = vrot.slane %v621, %v644
      %v646 = vlaneseq
      %v647 = vshrl.u32 %v646, 7
      %v648 = vsub.s32 5, %v647
      %v649 = vrot.slane %v621, %v648
      %v650 = vlaneseq
      %v651 = vshrl.u32 %v650, 7
      %v652 = vsub.s32 6, %v651
      %v653 = vrot.slane %v621, %v652
      %v654 = vlaneseq
      %v655 = vshrl.u32 %v654, 7
      %v656 = vsub.s32 7, %v655
      %v657 = vrot.slane %v621, %v656
      %v666 = vsub.f32 %v537, %v629
      %v667 = vsub.f32 %v538, %v633
      %v668 = vsub.f32 %v539, %v637
      %v669 = vsub.f32 %v540, %v641
      %v670 = vsub.f32 %v541, %v645
      %v671 = vsub.f32 %v542, %v649
      %v672 = vsub.f32 %v543, %v653
      %v673 = vsub.f32 %v544, %v657
      %v674 = vmul.f32 %v666, 1.442695
      %v675 = vpow.pop %v674
      %v676 = vmul.f32 %v667, 1.442695
      %v677 = vpow.pop %v676
      %v678 = vmul.f32 %v668, 1.442695
      %v679 = vpow.pop %v678
      %v680 = vmul.f32 %v669, 1.442695
      %v681 = vpow.pop %v680
      %v682 = vmul.f32 %v670, 1.442695
      %v683 = vpow.pop %v682
      %v684 = vmul.f32 %v671, 1.442695
      %v685 = vpow.pop %v684
      %v686 = vmul.f32 %v672, 1.442695
      %v687 = vpow.pop %v686
      %v688 = vmul.f32 %v673, 1.442695
      %v689 = vpow.pop %v688
      %698 = vset.pattern.permute.xlu0 0
      %699 = vperm.xlu0 %698, %v675
      %v700 = vpop.permute.xlu0 %699
      %701 = vset.pattern.permute.xlu0 0
      %702 = vperm.xlu0 %701, %v677
      %v703 = vpop.permute.xlu0 %702
      %704 = vset.pattern.permute.xlu0 0
      %705 = vperm.xlu0 %704, %v679
      %v706 = vpop.permute.xlu0 %705
      %707 = vset.pattern.permute.xlu0 0
      %708 = vperm.xlu0 %707, %v681
      %v709 = vpop.permute.xlu0 %708
      %710 = vset.pattern.permute.xlu0 0
      %711 = vperm.xlu0 %710, %v683
      %v712 = vpop.permute.xlu0 %711
      %713 = vset.pattern.permute.xlu0 0
      %714 = vperm.xlu0 %713, %v685
      %v715 = vpop.permute.xlu0 %714
      %716 = vset.pattern.permute.xlu0 0
      %717 = vperm.xlu0 %716, %v687
      %v718 = vpop.permute.xlu0 %717
      %719 = vset.pattern.permute.xlu0 0
      %720 = vperm.xlu0 %719, %v689
      %v721 = vpop.permute.xlu0 %720
      %v722 = vlaneseq
      %v723 = vshrl.u32 %v722, 7
      %v724 = vsub.s32 %v415, %v723
      %v725 = vrot.slane %v700, %v724
      %v726 = vlaneseq
      %v727 = vshrl.u32 %v726, 7
      %v728 = vsub.s32 %v415, %v727
      %v729 = vrot.slane %v703, %v728
      %v730 = vlaneseq
      %v731 = vshrl.u32 %v730, 7
      %v732 = vsub.s32 %v415, %v731
      %v733 = vrot.slane %v706, %v732
      %v734 = vlaneseq
      %v735 = vshrl.u32 %v734, 7
      %v736 = vsub.s32 %v415, %v735
      %v737 = vrot.slane %v709, %v736
      %v738 = vlaneseq
      %v739 = vshrl.u32 %v738, 7
      %v740 = vsub.s32 %v415, %v739
      %v741 = vrot.slane %v712, %v740
      %v742 = vlaneseq
      %v743 = vshrl.u32 %v742, 7
      %v744 = vsub.s32 %v415, %v743
      %v745 = vrot.slane %v715, %v744
      %v746 = vlaneseq
      %v747 = vshrl.u32 %v746, 7
      %v748 = vsub.s32 %v415, %v747
      %v749 = vrot.slane %v718, %v748
      %v750 = vlaneseq
      %v751 = vshrl.u32 %v750, 7
      %v752 = vsub.s32 %v415, %v751
      %v753 = vrot.slane %v721, %v752
      %v754 = vsel %vm448, %v729, %v725
      %v755 = vsel %vm450, %v733, %v754
      %v756 = vsel %vm452, %v737, %v755
      %v757 = vsel %vm454, %v741, %v756
      %v758 = vsel %vm456, %v745, %v757
      %v759 = vsel %vm458, %v749, %v758
      %v760 = vsel %vm460, %v753, %v759
      %v762 = vsel %vm617, %v760, 0.0
      %763 = vadd.xlane.f32.xlu0 %v762
      %v764 = vpop.xlane.xlu0 %763
      %v765 = vadd.f32 %v624, %v764
      %v766 = vlog2.pop %v765
      %v767 = vmul.f32 %v766, 0.6931472
      %v768 = vadd.f32 %v621, %v767
      %v769 = vsub.f32 %v768, %v283
      %s770 = smul.u32 %s14, 8
      %v771 = vlaneseq
      %v772 = vshrl.u32 %v771, 7
      %v773 = vstv %s770
      %v774 = vadd.s32 %v773, %v772
      %vm775 = vcmp.lt.s32.totalorder %v774, 16
      %v776 = vsel %vm775, %v769, 0.0
      %vm777 = vcmask 7168
      %778 = vst.msk [vmem:[%s204] sm:$0xff] %vm777, %v776
      %p779 = scmp.lt.s32.totalorder %s14, 1
      %s780 = scalar_select %p779, %s14, 1
      %s781 = smul.addr %s780, 8
      %s782 = scalar_lea.vmem %s3, %s781
      // Predicated region
      $region33: #{tpu_custom_call.1} parent=31 // pred_check
        %p783 = pneg %p110
      $region34: #{tpu_custom_call.1} parent=31 // pred_check_branch
        %785 = sbr.rel (%p783) target = $region36
      $region35: #{tpu_custom_call.1} parent=31 // pred_region
        _
      $region36: #{tpu_custom_call.1} parent=31 // pred_fallthru
        _
    $region32: #{tpu_custom_call.1} parent=5 // pred_fallthru
      _
    %p786 = scmp.le.s32.totalorder 2, %s9
    // Predicated region
    $region37: #{tpu_custom_call.1} parent=5 // pred_check
      %p787 = pneg %p786
    $region38: #{tpu_custom_call.1} parent=5 // pred_check_branch
      %789 = sbr.rel (%p787) target = $region40
    $region39: #{tpu_custom_call.1} parent=5 // pred_region
      %s790 = ssub.s32 %s9, 2
      // Predicated region
      $region41: #{tpu_custom_call.1} parent=39 // pred_check
        %p791 = pneg %p116
      $region42: #{tpu_custom_call.1} parent=39 // pred_check_branch
        %793 = sbr.rel (%p791) target = $region44
      $region43: #{tpu_custom_call.1} parent=39 // pred_region
        %p794 = scmp.lt.s32.totalorder %s15, 1
        %s795 = scalar_select %p794, %s15, 1
        %s796 = smul.addr %s795, 8
        %s797 = scalar_lea.vmem %s3, %s796
      $region44: #{tpu_custom_call.1} parent=39 // pred_fallthru
        _
    $region40: #{tpu_custom_call.1} parent=5 // pred_fallthru
      _
  $region6: #{tpu_custom_call.1} parent=0 // loop_footer
    %s13 = sadd.s32 1, %s9
  $region7: #{tpu_custom_call.1} parent=0 // loop_footer_branch
    %8 = sbr.rel target = $region3
  $region8: #{tpu_custom_call.1} parent=0 // loop_exit
    _

</llo_original>
